<compile_context>
chip_gen: v7x
topology: tpu7x:2x2x1
jax: 0.10.0
libtpu: 0.0.40
codegen_flags: <defaults>
</compile_context>

<pallas_src>
import jax
import jax.numpy as jnp
from jax import lax
from jax.experimental import pallas as pl
from jax.experimental.pallas import tpu as pltpu


def _lstm_kernel(x2d_ref, wih_t_ref, whh_t_ref, b_ref, hlast_ref):
    """Whole LSTM recurrence in one kernel invocation.

    x2d_ref  : (S*B, I)  inputs, rows ordered time-major (t major, b minor)
    wih_t_ref: (I, 4H)   input->hidden weights, transposed
    whh_t_ref: (H, 4H)   hidden->hidden weights, transposed
    b_ref    : (1, 4H)   combined bias (b_ih + b_hh)
    hlast_ref: (S, H)    h_t[B-1] for each time step (only rows the head uses)
    """
    S, H = hlast_ref.shape
    B = x2d_ref.shape[0] // S

    # Hoisted input projection: one well-shaped matmul for all time steps,
    # bias broadcast folded in exactly once (outside the serial recurrence).
    gx = (jnp.dot(x2d_ref[...], wih_t_ref[...],
                  preferred_element_type=jnp.float32)
          + b_ref[...])                                   # (S*B, 4H)

    whh_t = whh_t_ref[...]                                # (H, 4H), loaded once

    h = jnp.zeros((B, H), jnp.float32)
    c = jnp.zeros((B, H), jnp.float32)

    # S is small and static: fully unrolled serial recurrence with static
    # slice indices; only the h @ W_hh matmul sits on the critical path.
    for t in range(S):
        gates = gx[t * B:(t + 1) * B, :] + jnp.dot(
            h, whh_t, preferred_element_type=jnp.float32)  # (B, 4H)

        # Two full-width activations instead of four quarter-width ones.
        # PyTorch gate order: i, f, g, o.
        sg = jax.nn.sigmoid(gates)
        tg = jnp.tanh(gates)
        i_g = sg[:, 0 * H:1 * H]
        f_g = sg[:, 1 * H:2 * H]
        g_g = tg[:, 2 * H:3 * H]
        o_g = sg[:, 3 * H:4 * H]

        c = f_g * c + i_g * g_g
        h = o_g * jnp.tanh(c)

        # Only batch row B-1 is consumed downstream (predictions[:, -1, :]).
        hlast_ref[t:t + 1, :] = h[B - 1:B, :]


def lstm_forward(x, w_ih, w_hh, b_ih, b_hh, w_lin, b_lin):
    """x: (S, B, I) float32, time-major. Returns predictions[:, -1, :], shape (S, 2)."""
    S, B, I = x.shape
    H = w_hh.shape[1]
    assert w_ih.shape == (4 * H, I)
    assert w_hh.shape == (4 * H, H)
    assert w_lin.shape == (2, H)

    x2d = jnp.asarray(x, jnp.float32).reshape(S * B, I)
    wih_t = jnp.asarray(w_ih.T, jnp.float32)               # (I, 4H)
    whh_t = jnp.asarray(w_hh.T, jnp.float32)               # (H, 4H)
    b = jnp.asarray((b_ih + b_hh)[None, :], jnp.float32)   # (1, 4H)

    h_last = pl.pallas_call(
        _lstm_kernel,
        out_shape=jax.ShapeDtypeStruct((S, H), jnp.float32),
        in_specs=[pl.BlockSpec(memory_space=pltpu.MemorySpace.VMEM)] * 4,
        out_specs=pl.BlockSpec(memory_space=pltpu.MemorySpace.VMEM),
    )(x2d, wih_t, whh_t, b)

    # Output head applied once, outside the recurrence; doing it per step
    # in-kernel would force 2-lane-wide masked stores and S redundant matmuls.
    return h_last @ jnp.asarray(w_lin.T, jnp.float32) + jnp.asarray(b_lin, jnp.float32)


def lstm_forward_ref(x, w_ih, w_hh, b_ih, b_hh, w_lin, b_lin):
    """Pure-JAX reference mirroring PyTorch semantics."""
    S, B, I = x.shape
    H = w_hh.shape[1]

    def step(carry, x_t):
        h, c = carry
        gates = x_t @ w_ih.T + b_ih + h @ w_hh.T + b_hh
        i_g, f_g, g_g, o_g = jnp.split(gates, 4, axis=-1)
        i_g = jax.nn.sigmoid(i_g)
        f_g = jax.nn.sigmoid(f_g)
        g_g = jnp.tanh(g_g)
        o_g = jax.nn.sigmoid(o_g)
        c = f_g * c + i_g * g_g
        h = o_g * jnp.tanh(c)
        return (h, c), h

    init = (jnp.zeros((B, H), jnp.float32), jnp.zeros((B, H), jnp.float32))
    _, hs = lax.scan(step, init, x)
    preds = hs @ w_lin.T + b_lin
    return preds[:, -1, :]


if __name__ == "__main__":
    # Small shapes consistent with the module: input_size=2, hidden=32,
    # step == batch == 8, seq_len = 8.
    SEQ, STEP, INPUT, HIDDEN = 8, 8, 2, 32

    key = jax.random.PRNGKey(0)
    k_x, k_wih, k_whh, k_bih, k_bhh, k_wl, k_bl = jax.random.split(key, 7)

    bound = 1.0 / jnp.sqrt(HIDDEN)  # PyTorch LSTM/Linear uniform init bound
    x = jax.random.normal(k_x, (SEQ, STEP, INPUT), jnp.float32)
    w_ih = jax.random.uniform(k_wih, (4 * HIDDEN, INPUT), jnp.float32, -bound, bound)
    w_hh = jax.random.uniform(k_whh, (4 * HIDDEN, HIDDEN), jnp.float32, -bound, bound)
    b_ih = jax.random.uniform(k_bih, (4 * HIDDEN,), jnp.float32, -bound, bound)
    b_hh = jax.random.uniform(k_bhh, (4 * HIDDEN,), jnp.float32, -bound, bound)
    w_lin = jax.random.uniform(k_wl, (2, HIDDEN), jnp.float32, -bound, bound)
    b_lin = jax.random.uniform(k_bl, (2,), jnp.float32, -bound, bound)

    out = lstm_forward(x, w_ih, w_hh, b_ih, b_hh, w_lin, b_lin)
    out = jax.block_until_ready(out)

    ref = lstm_forward_ref(x, w_ih, w_hh, b_ih, b_hh, w_lin, b_lin)
    assert out.shape == (SEQ, 2), out.shape
    assert jnp.allclose(out, ref, atol=1e-5, rtol=1e-5), (out, ref)

    print("KERNEL_OK")
</pallas_src>

<mosaic_0001>
module attributes {stable_mosaic.version = 11 : i64} {
  func.func @_lstm_kernel(%arg0: memref<64x2xf32, #tpu.memory_space<vmem>>, %arg1: memref<2x128xf32, #tpu.memory_space<vmem>>, %arg2: memref<32x128xf32, #tpu.memory_space<vmem>>, %arg3: memref<1x128xf32, #tpu.memory_space<vmem>>, %arg4: memref<8x32xf32, #tpu.memory_space<vmem>>) attributes {dimension_semantics = [], scalar_prefetch = 0 : i64, scratch_operands = 0 : i64, tpu.core_type = #tpu.core_type<tc>} {
    %c0 = arith.constant 0 : index
    %c0_0 = arith.constant 0 : index
    %0 = vector.load %arg0[%c0, %c0_0] : memref<64x2xf32, #tpu.memory_space<vmem>>, vector<64x2xf32>
    %c0_1 = arith.constant 0 : index
    %c0_2 = arith.constant 0 : index
    %1 = vector.load %arg1[%c0_1, %c0_2] : memref<2x128xf32, #tpu.memory_space<vmem>>, vector<2x128xf32>
    %cst = arith.constant dense<0.000000e+00> : vector<64x128xf32>
    %2 = tpu.matmul %0, %1, %cst {dimension_numbers = #tpu.dot_dimension_numbers<[1], [0], [0], [1], [0, 0, 1, 1], [], []>} : vector<64x2xf32>, vector<2x128xf32>, vector<64x128xf32> -> vector<64x128xf32>
    %c0_3 = arith.constant 0 : index
    %c0_4 = arith.constant 0 : index
    %3 = vector.load %arg3[%c0_3, %c0_4] : memref<1x128xf32, #tpu.memory_space<vmem>>, vector<1x128xf32>
    %4 = vector.broadcast %3 : vector<1x128xf32> to vector<64x128xf32>
    %5 = arith.addf %2, %4 : vector<64x128xf32>
    %c0_5 = arith.constant 0 : index
    %c0_6 = arith.constant 0 : index
    %6 = vector.load %arg2[%c0_5, %c0_6] : memref<32x128xf32, #tpu.memory_space<vmem>>, vector<32x128xf32>
    %cst_7 = arith.constant 0.000000e+00 : f32
    %7 = vector.broadcast %cst_7 : f32 to vector<8x32xf32>
    %cst_8 = arith.constant 0.000000e+00 : f32
    %8 = vector.broadcast %cst_8 : f32 to vector<8x32xf32>
    %9 = vector.extract_strided_slice %5 {offsets = [0, 0], sizes = [8, 128], strides = [1, 1]} : vector<64x128xf32> to vector<8x128xf32>
    %cst_9 = arith.constant dense<0.000000e+00> : vector<8x128xf32>
    %10 = tpu.matmul %7, %6, %cst_9 {dimension_numbers = #tpu.dot_dimension_numbers<[1], [0], [0], [1], [0, 0, 1, 1], [], []>} : vector<8x32xf32>, vector<32x128xf32>, vector<8x128xf32> -> vector<8x128xf32>
    %11 = arith.addf %9, %10 : vector<8x128xf32>
    %12 = arith.negf %11 : vector<8x128xf32>
    %13 = math.exp %12 : vector<8x128xf32>
    %cst_10 = arith.constant 1.000000e+00 : f32
    %14 = vector.broadcast %cst_10 : f32 to vector<8x128xf32>
    %15 = arith.addf %14, %13 : vector<8x128xf32>
    %16 = arith.divf %14, %15 : vector<8x128xf32>
    %17 = math.tanh %11 : vector<8x128xf32>
    %18 = vector.extract_strided_slice %16 {offsets = [0, 0], sizes = [8, 32], strides = [1, 1]} : vector<8x128xf32> to vector<8x32xf32>
    %19 = vector.extract_strided_slice %16 {offsets = [0, 32], sizes = [8, 32], strides = [1, 1]} : vector<8x128xf32> to vector<8x32xf32>
    %20 = vector.extract_strided_slice %17 {offsets = [0, 64], sizes = [8, 32], strides = [1, 1]} : vector<8x128xf32> to vector<8x32xf32>
    %21 = vector.extract_strided_slice %16 {offsets = [0, 96], sizes = [8, 32], strides = [1, 1]} : vector<8x128xf32> to vector<8x32xf32>
    %22 = arith.mulf %19, %8 : vector<8x32xf32>
    %23 = arith.mulf %18, %20 : vector<8x32xf32>
    %24 = arith.addf %22, %23 : vector<8x32xf32>
    %25 = math.tanh %24 : vector<8x32xf32>
    %26 = arith.mulf %21, %25 : vector<8x32xf32>
    %27 = vector.extract_strided_slice %26 {offsets = [7, 0], sizes = [1, 32], strides = [1, 1]} : vector<8x32xf32> to vector<1x32xf32>
    %c0_11 = arith.constant 0 : index
    %c0_12 = arith.constant 0 : index
    %28 = vector.load %arg4[%c0_11, %c0_12] : memref<8x32xf32, #tpu.memory_space<vmem>>, vector<1x32xf32>
    tpu.vector_store %arg4[%c0_11, %c0_12], %27 {strides = array<i32>} : memref<8x32xf32, #tpu.memory_space<vmem>>, vector<1x32xf32>,
    %29 = vector.extract_strided_slice %5 {offsets = [8, 0], sizes = [8, 128], strides = [1, 1]} : vector<64x128xf32> to vector<8x128xf32>
    %cst_13 = arith.constant dense<0.000000e+00> : vector<8x128xf32>
    %30 = tpu.matmul %26, %6, %cst_13 {dimension_numbers = #tpu.dot_dimension_numbers<[1], [0], [0], [1], [0, 0, 1, 1], [], []>} : vector<8x32xf32>, vector<32x128xf32>, vector<8x128xf32> -> vector<8x128xf32>
    %31 = arith.addf %29, %30 : vector<8x128xf32>
    %32 = arith.negf %31 : vector<8x128xf32>
    %33 = math.exp %32 : vector<8x128xf32>
    %cst_14 = arith.constant 1.000000e+00 : f32
    %34 = vector.broadcast %cst_14 : f32 to vector<8x128xf32>
    %35 = arith.addf %34, %33 : vector<8x128xf32>
    %36 = arith.divf %34, %35 : vector<8x128xf32>
    %37 = math.tanh %31 : vector<8x128xf32>
    %38 = vector.extract_strided_slice %36 {offsets = [0, 0], sizes = [8, 32], strides = [1, 1]} : vector<8x128xf32> to vector<8x32xf32>
    %39 = vector.extract_strided_slice %36 {offsets = [0, 32], sizes = [8, 32], strides = [1, 1]} : vector<8x128xf32> to vector<8x32xf32>
    %40 = vector.extract_strided_slice %37 {offsets = [0, 64], sizes = [8, 32], strides = [1, 1]} : vector<8x128xf32> to vector<8x32xf32>
    %41 = vector.extract_strided_slice %36 {offsets = [0, 96], sizes = [8, 32], strides = [1, 1]} : vector<8x128xf32> to vector<8x32xf32>
    %42 = arith.mulf %39, %24 : vector<8x32xf32>
    %43 = arith.mulf %38, %40 : vector<8x32xf32>
    %44 = arith.addf %42, %43 : vector<8x32xf32>
    %45 = math.tanh %44 : vector<8x32xf32>
    %46 = arith.mulf %41, %45 : vector<8x32xf32>
    %47 = vector.extract_strided_slice %46 {offsets = [7, 0], sizes = [1, 32], strides = [1, 1]} : vector<8x32xf32> to vector<1x32xf32>
    %c1 = arith.constant 1 : index
    %c0_15 = arith.constant 0 : index
    %48 = vector.load %arg4[%c1, %c0_15] : memref<8x32xf32, #tpu.memory_space<vmem>>, vector<1x32xf32>
    tpu.vector_store %arg4[%c1, %c0_15], %47 {strides = array<i32>} : memref<8x32xf32, #tpu.memory_space<vmem>>, vector<1x32xf32>,
    %49 = vector.extract_strided_slice %5 {offsets = [16, 0], sizes = [8, 128], strides = [1, 1]} : vector<64x128xf32> to vector<8x128xf32>
    %cst_16 = arith.constant dense<0.000000e+00> : vector<8x128xf32>
    %50 = tpu.matmul %46, %6, %cst_16 {dimension_numbers = #tpu.dot_dimension_numbers<[1], [0], [0], [1], [0, 0, 1, 1], [], []>} : vector<8x32xf32>, vector<32x128xf32>, vector<8x128xf32> -> vector<8x128xf32>
    %51 = arith.addf %49, %50 : vector<8x128xf32>
    %52 = arith.negf %51 : vector<8x128xf32>
    %53 = math.exp %52 : vector<8x128xf32>
    %cst_17 = arith.constant 1.000000e+00 : f32
    %54 = vector.broadcast %cst_17 : f32 to vector<8x128xf32>
    %55 = arith.addf %54, %53 : vector<8x128xf32>
    %56 = arith.divf %54, %55 : vector<8x128xf32>
    %57 = math.tanh %51 : vector<8x128xf32>
    %58 = vector.extract_strided_slice %56 {offsets = [0, 0], sizes = [8, 32], strides = [1, 1]} : vector<8x128xf32> to vector<8x32xf32>
    %59 = vector.extract_strided_slice %56 {offsets = [0, 32], sizes = [8, 32], strides = [1, 1]} : vector<8x128xf32> to vector<8x32xf32>
    %60 = vector.extract_strided_slice %57 {offsets = [0, 64], sizes = [8, 32], strides = [1, 1]} : vector<8x128xf32> to vector<8x32xf32>
    %61 = vector.extract_strided_slice %56 {offsets = [0, 96], sizes = [8, 32], strides = [1, 1]} : vector<8x128xf32> to vector<8x32xf32>
    %62 = arith.mulf %59, %44 : vector<8x32xf32>
    %63 = arith.mulf %58, %60 : vector<8x32xf32>
    %64 = arith.addf %62, %63 : vector<8x32xf32>
    %65 = math.tanh %64 : vector<8x32xf32>
    %66 = arith.mulf %61, %65 : vector<8x32xf32>
    %67 = vector.extract_strided_slice %66 {offsets = [7, 0], sizes = [1, 32], strides = [1, 1]} : vector<8x32xf32> to vector<1x32xf32>
    %c2 = arith.constant 2 : index
    %c0_18 = arith.constant 0 : index
    %68 = vector.load %arg4[%c2, %c0_18] : memref<8x32xf32, #tpu.memory_space<vmem>>, vector<1x32xf32>
    tpu.vector_store %arg4[%c2, %c0_18], %67 {strides = array<i32>} : memref<8x32xf32, #tpu.memory_space<vmem>>, vector<1x32xf32>,
    %69 = vector.extract_strided_slice %5 {offsets = [24, 0], sizes = [8, 128], strides = [1, 1]} : vector<64x128xf32> to vector<8x128xf32>
    %cst_19 = arith.constant dense<0.000000e+00> : vector<8x128xf32>
    %70 = tpu.matmul %66, %6, %cst_19 {dimension_numbers = #tpu.dot_dimension_numbers<[1], [0], [0], [1], [0, 0, 1, 1], [], []>} : vector<8x32xf32>, vector<32x128xf32>, vector<8x128xf32> -> vector<8x128xf32>
    %71 = arith.addf %69, %70 : vector<8x128xf32>
    %72 = arith.negf %71 : vector<8x128xf32>
    %73 = math.exp %72 : vector<8x128xf32>
    %cst_20 = arith.constant 1.000000e+00 : f32
    %74 = vector.broadcast %cst_20 : f32 to vector<8x128xf32>
    %75 = arith.addf %74, %73 : vector<8x128xf32>
    %76 = arith.divf %74, %75 : vector<8x128xf32>
    %77 = math.tanh %71 : vector<8x128xf32>
    %78 = vector.extract_strided_slice %76 {offsets = [0, 0], sizes = [8, 32], strides = [1, 1]} : vector<8x128xf32> to vector<8x32xf32>
    %79 = vector.extract_strided_slice %76 {offsets = [0, 32], sizes = [8, 32], strides = [1, 1]} : vector<8x128xf32> to vector<8x32xf32>
    %80 = vector.extract_strided_slice %77 {offsets = [0, 64], sizes = [8, 32], strides = [1, 1]} : vector<8x128xf32> to vector<8x32xf32>
    %81 = vector.extract_strided_slice %76 {offsets = [0, 96], sizes = [8, 32], strides = [1, 1]} : vector<8x128xf32> to vector<8x32xf32>
    %82 = arith.mulf %79, %64 : vector<8x32xf32>
    %83 = arith.mulf %78, %80 : vector<8x32xf32>
    %84 = arith.addf %82, %83 : vector<8x32xf32>
    %85 = math.tanh %84 : vector<8x32xf32>
    %86 = arith.mulf %81, %85 : vector<8x32xf32>
    %87 = vector.extract_strided_slice %86 {offsets = [7, 0], sizes = [1, 32], strides = [1, 1]} : vector<8x32xf32> to vector<1x32xf32>
    %c3 = arith.constant 3 : index
    %c0_21 = arith.constant 0 : index
    %88 = vector.load %arg4[%c3, %c0_21] : memref<8x32xf32, #tpu.memory_space<vmem>>, vector<1x32xf32>
    tpu.vector_store %arg4[%c3, %c0_21], %87 {strides = array<i32>} : memref<8x32xf32, #tpu.memory_space<vmem>>, vector<1x32xf32>,
    %89 = vector.extract_strided_slice %5 {offsets = [32, 0], sizes = [8, 128], strides = [1, 1]} : vector<64x128xf32> to vector<8x128xf32>
    %cst_22 = arith.constant dense<0.000000e+00> : vector<8x128xf32>
    %90 = tpu.matmul %86, %6, %cst_22 {dimension_numbers = #tpu.dot_dimension_numbers<[1], [0], [0], [1], [0, 0, 1, 1], [], []>} : vector<8x32xf32>, vector<32x128xf32>, vector<8x128xf32> -> vector<8x128xf32>
    %91 = arith.addf %89, %90 : vector<8x128xf32>
    %92 = arith.negf %91 : vector<8x128xf32>
    %93 = math.exp %92 : vector<8x128xf32>
    %cst_23 = arith.constant 1.000000e+00 : f32
    %94 = vector.broadcast %cst_23 : f32 to vector<8x128xf32>
    %95 = arith.addf %94, %93 : vector<8x128xf32>
    %96 = arith.divf %94, %95 : vector<8x128xf32>
    %97 = math.tanh %91 : vector<8x128xf32>
    %98 = vector.extract_strided_slice %96 {offsets = [0, 0], sizes = [8, 32], strides = [1, 1]} : vector<8x128xf32> to vector<8x32xf32>
    %99 = vector.extract_strided_slice %96 {offsets = [0, 32], sizes = [8, 32], strides = [1, 1]} : vector<8x128xf32> to vector<8x32xf32>
    %100 = vector.extract_strided_slice %97 {offsets = [0, 64], sizes = [8, 32], strides = [1, 1]} : vector<8x128xf32> to vector<8x32xf32>
    %101 = vector.extract_strided_slice %96 {offsets = [0, 96], sizes = [8, 32], strides = [1, 1]} : vector<8x128xf32> to vector<8x32xf32>
    %102 = arith.mulf %99, %84 : vector<8x32xf32>
    %103 = arith.mulf %98, %100 : vector<8x32xf32>
    %104 = arith.addf %102, %103 : vector<8x32xf32>
    %105 = math.tanh %104 : vector<8x32xf32>
    %106 = arith.mulf %101, %105 : vector<8x32xf32>
    %107 = vector.extract_strided_slice %106 {offsets = [7, 0], sizes = [1, 32], strides = [1, 1]} : vector<8x32xf32> to vector<1x32xf32>
    %c4 = arith.constant 4 : index
    %c0_24 = arith.constant 0 : index
    %108 = vector.load %arg4[%c4, %c0_24] : memref<8x32xf32, #tpu.memory_space<vmem>>, vector<1x32xf32>
    tpu.vector_store %arg4[%c4, %c0_24], %107 {strides = array<i32>} : memref<8x32xf32, #tpu.memory_space<vmem>>, vector<1x32xf32>,
    %109 = vector.extract_strided_slice %5 {offsets = [40, 0], sizes = [8, 128], strides = [1, 1]} : vector<64x128xf32> to vector<8x128xf32>
    %cst_25 = arith.constant dense<0.000000e+00> : vector<8x128xf32>
    %110 = tpu.matmul %106, %6, %cst_25 {dimension_numbers = #tpu.dot_dimension_numbers<[1], [0], [0], [1], [0, 0, 1, 1], [], []>} : vector<8x32xf32>, vector<32x128xf32>, vector<8x128xf32> -> vector<8x128xf32>
    %111 = arith.addf %109, %110 : vector<8x128xf32>
    %112 = arith.negf %111 : vector<8x128xf32>
    %113 = math.exp %112 : vector<8x128xf32>
    %cst_26 = arith.constant 1.000000e+00 : f32
    %114 = vector.broadcast %cst_26 : f32 to vector<8x128xf32>
    %115 = arith.addf %114, %113 : vector<8x128xf32>
    %116 = arith.divf %114, %115 : vector<8x128xf32>
    %117 = math.tanh %111 : vector<8x128xf32>
    %118 = vector.extract_strided_slice %116 {offsets = [0, 0], sizes = [8, 32], strides = [1, 1]} : vector<8x128xf32> to vector<8x32xf32>
    %119 = vector.extract_strided_slice %116 {offsets = [0, 32], sizes = [8, 32], strides = [1, 1]} : vector<8x128xf32> to vector<8x32xf32>
    %120 = vector.extract_strided_slice %117 {offsets = [0, 64], sizes = [8, 32], strides = [1, 1]} : vector<8x128xf32> to vector<8x32xf32>
    %121 = vector.extract_strided_slice %116 {offsets = [0, 96], sizes = [8, 32], strides = [1, 1]} : vector<8x128xf32> to vector<8x32xf32>
    %122 = arith.mulf %119, %104 : vector<8x32xf32>
    %123 = arith.mulf %118, %120 : vector<8x32xf32>
    %124 = arith.addf %122, %123 : vector<8x32xf32>
    %125 = math.tanh %124 : vector<8x32xf32>
    %126 = arith.mulf %121, %125 : vector<8x32xf32>
    %127 = vector.extract_strided_slice %126 {offsets = [7, 0], sizes = [1, 32], strides = [1, 1]} : vector<8x32xf32> to vector<1x32xf32>
    %c5 = arith.constant 5 : index
    %c0_27 = arith.constant 0 : index
    %128 = vector.load %arg4[%c5, %c0_27] : memref<8x32xf32, #tpu.memory_space<vmem>>, vector<1x32xf32>
    tpu.vector_store %arg4[%c5, %c0_27], %127 {strides = array<i32>} : memref<8x32xf32, #tpu.memory_space<vmem>>, vector<1x32xf32>,
    %129 = vector.extract_strided_slice %5 {offsets = [48, 0], sizes = [8, 128], strides = [1, 1]} : vector<64x128xf32> to vector<8x128xf32>
    %cst_28 = arith.constant dense<0.000000e+00> : vector<8x128xf32>
    %130 = tpu.matmul %126, %6, %cst_28 {dimension_numbers = #tpu.dot_dimension_numbers<[1], [0], [0], [1], [0, 0, 1, 1], [], []>} : vector<8x32xf32>, vector<32x128xf32>, vector<8x128xf32> -> vector<8x128xf32>
    %131 = arith.addf %129, %130 : vector<8x128xf32>
    %132 = arith.negf %131 : vector<8x128xf32>
    %133 = math.exp %132 : vector<8x128xf32>
    %cst_29 = arith.constant 1.000000e+00 : f32
    %134 = vector.broadcast %cst_29 : f32 to vector<8x128xf32>
    %135 = arith.addf %134, %133 : vector<8x128xf32>
    %136 = arith.divf %134, %135 : vector<8x128xf32>
    %137 = math.tanh %131 : vector<8x128xf32>
    %138 = vector.extract_strided_slice %136 {offsets = [0, 0], sizes = [8, 32], strides = [1, 1]} : vector<8x128xf32> to vector<8x32xf32>
    %139 = vector.extract_strided_slice %136 {offsets = [0, 32], sizes = [8, 32], strides = [1, 1]} : vector<8x128xf32> to vector<8x32xf32>
    %140 = vector.extract_strided_slice %137 {offsets = [0, 64], sizes = [8, 32], strides = [1, 1]} : vector<8x128xf32> to vector<8x32xf32>
    %141 = vector.extract_strided_slice %136 {offsets = [0, 96], sizes = [8, 32], strides = [1, 1]} : vector<8x128xf32> to vector<8x32xf32>
    %142 = arith.mulf %139, %124 : vector<8x32xf32>
    %143 = arith.mulf %138, %140 : vector<8x32xf32>
    %144 = arith.addf %142, %143 : vector<8x32xf32>
    %145 = math.tanh %144 : vector<8x32xf32>
    %146 = arith.mulf %141, %145 : vector<8x32xf32>
    %147 = vector.extract_strided_slice %146 {offsets = [7, 0], sizes = [1, 32], strides = [1, 1]} : vector<8x32xf32> to vector<1x32xf32>
    %c6 = arith.constant 6 : index
    %c0_30 = arith.constant 0 : index
    %148 = vector.load %arg4[%c6, %c0_30] : memref<8x32xf32, #tpu.memory_space<vmem>>, vector<1x32xf32>
    tpu.vector_store %arg4[%c6, %c0_30], %147 {strides = array<i32>} : memref<8x32xf32, #tpu.memory_space<vmem>>, vector<1x32xf32>,
    %149 = vector.extract_strided_slice %5 {offsets = [56, 0], sizes = [8, 128], strides = [1, 1]} : vector<64x128xf32> to vector<8x128xf32>
    %cst_31 = arith.constant dense<0.000000e+00> : vector<8x128xf32>
    %150 = tpu.matmul %146, %6, %cst_31 {dimension_numbers = #tpu.dot_dimension_numbers<[1], [0], [0], [1], [0, 0, 1, 1], [], []>} : vector<8x32xf32>, vector<32x128xf32>, vector<8x128xf32> -> vector<8x128xf32>
    %151 = arith.addf %149, %150 : vector<8x128xf32>
    %152 = arith.negf %151 : vector<8x128xf32>
    %153 = math.exp %152 : vector<8x128xf32>
    %cst_32 = arith.constant 1.000000e+00 : f32
    %154 = vector.broadcast %cst_32 : f32 to vector<8x128xf32>
    %155 = arith.addf %154, %153 : vector<8x128xf32>
    %156 = arith.divf %154, %155 : vector<8x128xf32>
    %157 = math.tanh %151 : vector<8x128xf32>
    %158 = vector.extract_strided_slice %156 {offsets = [0, 0], sizes = [8, 32], strides = [1, 1]} : vector<8x128xf32> to vector<8x32xf32>
    %159 = vector.extract_strided_slice %156 {offsets = [0, 32], sizes = [8, 32], strides = [1, 1]} : vector<8x128xf32> to vector<8x32xf32>
    %160 = vector.extract_strided_slice %157 {offsets = [0, 64], sizes = [8, 32], strides = [1, 1]} : vector<8x128xf32> to vector<8x32xf32>
    %161 = vector.extract_strided_slice %156 {offsets = [0, 96], sizes = [8, 32], strides = [1, 1]} : vector<8x128xf32> to vector<8x32xf32>
    %162 = arith.mulf %159, %144 : vector<8x32xf32>
    %163 = arith.mulf %158, %160 : vector<8x32xf32>
    %164 = arith.addf %162, %163 : vector<8x32xf32>
    %165 = math.tanh %164 : vector<8x32xf32>
    %166 = arith.mulf %161, %165 : vector<8x32xf32>
    %167 = vector.extract_strided_slice %166 {offsets = [7, 0], sizes = [1, 32], strides = [1, 1]} : vector<8x32xf32> to vector<1x32xf32>
    %c7 = arith.constant 7 : index
    %c0_33 = arith.constant 0 : index
    %168 = vector.load %arg4[%c7, %c0_33] : memref<8x32xf32, #tpu.memory_space<vmem>>, vector<1x32xf32>
    tpu.vector_store %arg4[%c7, %c0_33], %167 {strides = array<i32>} : memref<8x32xf32, #tpu.memory_space<vmem>>, vector<1x32xf32>,
    return
  }
}

</mosaic_0001>

<llo_original>
// kernel: tpu_custom_call.1
$region0: #{tpu_custom_call.1}
  #allocation0 [shape = 'u32[]', space=smem, size = 0x4, offset = 0x4, fixed_abs, tag = 'smem constant byte address 0x4 - core index']
  #allocation1 [shape = 'u32[144,128]{1,0:T(1,128)}', space=vmem, size = 0x12000, scoped, tag = 'internal scratch']
  %s0 = inlined_call_operand.vmem [shape: f32[64,2], index: 0, kind: input, shape index: {}]
  %s1 = inlined_call_operand.vmem [shape: f32[2,128], index: 1, kind: input, shape index: {}]
  %s2 = inlined_call_operand.vmem [shape: f32[32,128], index: 2, kind: input, shape index: {}]
  %s3 = inlined_call_operand.vmem [shape: f32[1,128], index: 3, kind: input, shape index: {}]
  %s4 = inlined_call_operand.hbm [shape: f32[8,32], index: 4, kind: output, shape index: {}]
  %s5 = sld [smem:[#allocation0]]
  $region26: #{tpu_custom_call.1} parent=0
    _
  %s7 = ssub.s32 1, %s5
  %s8 = scalar_select 0, %s7, %s5
  $region1: #{tpu_custom_call.1} parent=0
    #allocation2 [shape = 'u8[4096]{0}', space=vmem, size = 0x1000, scoped, tag = 'output window, operand 0, single buffered']
    #allocation3 [shape = 's32[1]{0}', space=sflag, size = 0x4, scoped, tag = 'scoped memory for tpu_custom_call.1']
    %9 = vsyncpa [#allocation3], 0
    // Predicated region
    $region2: #{tpu_custom_call.1} parent=1 // pred_check
      _
    $region3: #{tpu_custom_call.1} parent=1 // pred_check_branch
      %11 = sbr.rel (0) target = $region5
    $region4: #{tpu_custom_call.1} parent=1 // pred_region
      _
    $region5: #{tpu_custom_call.1} parent=1 // pred_fallthru
      _
    // Predicated region
    $region6: #{tpu_custom_call.1} parent=1 // pred_check
      _
    $region7: #{tpu_custom_call.1} parent=1 // pred_check_branch
      %13 = sbr.rel (0) target = $region9
    $region8: #{tpu_custom_call.1} parent=1 // pred_region
      _
    $region9: #{tpu_custom_call.1} parent=1 // pred_fallthru
      _
    // Predicated region
    $region10: #{tpu_custom_call.1} parent=1 // pred_check
      _
    $region11: #{tpu_custom_call.1} parent=1 // pred_check_branch
      %15 = sbr.rel (0) target = $region13
    $region12: #{tpu_custom_call.1} parent=1 // pred_region
      _
    $region13: #{tpu_custom_call.1} parent=1 // pred_fallthru
      _
    // Predicated region
    $region14: #{tpu_custom_call.1} parent=1 // pred_check
      _
    $region15: #{tpu_custom_call.1} parent=1 // pred_check_branch
      %17 = sbr.rel (0) target = $region17
    $region16: #{tpu_custom_call.1} parent=1 // pred_region
      _
    $region17: #{tpu_custom_call.1} parent=1 // pred_fallthru
      _
    %v18 = vld [vmem:[%s0] sm:$0xff]
    %v19 = vld [vmem:[%s0 + $0x8] sm:$0xff]
    %v20 = vld [vmem:[%s0 + $0x10] sm:$0xff]
    %v21 = vld [vmem:[%s0 + $0x18] sm:$0xff]
    %v22 = vld [vmem:[%s0 + $0x20] sm:$0xff]
    %v23 = vld [vmem:[%s0 + $0x28] sm:$0xff]
    %v24 = vld [vmem:[%s0 + $0x30] sm:$0xff]
    %v25 = vld [vmem:[%s0 + $0x38] sm:$0xff]
    %v26 = vld [vmem:[%s1] sm:$0x3]
    %v27 = vld [vmem:[%s3] sm:$0x1]
    %v29 = vlaneseq
    %v30 = vshrl.u32 %v29, 7
    %v31 = vsub.s32 0, %v30
    %v32 = vrot.slane %v27, %v31
    %vm34 = vcmask 15360
    %v36 = vsel %vm34, %v18, 0
    %v39 = vsel %vm34, %v19, 0
    %v42 = vsel %vm34, %v20, 0
    %v45 = vsel %vm34, %v21, 0
    %v48 = vsel %vm34, %v22, 0
    %v51 = vsel %vm34, %v23, 0
    %v54 = vsel %vm34, %v24, 0
    %v57 = vsel %vm34, %v25, 0
    %vm59 = vcmask 1041408
    %v61 = vsel %vm59, %v26, 0
    %63 = vmatprep.subr.mxu0 0.0
    %64 = vmatpush1.msra.mxu0 %v61
    %65 = vmatprep.subr.mxu0 0.0
    %66 = vmatpush1.msra.mxu0 0.0
    %67 = vmatprep.subr.mxu0 0.0
    %68 = vmatpush1.msra.mxu0 0.0
    %69 = vmatprep.subr.mxu0 0.0
    %70 = vmatpush1.msra.mxu0 0.0
    %71 = vmatprep.subr.mxu0 0.0
    %72 = vmatpush1.msra.mxu0 0.0
    %73 = vmatprep.subr.mxu0 0.0
    %74 = vmatpush1.msra.mxu0 0.0
    %75 = vmatprep.subr.mxu0 0.0
    %76 = vmatpush1.msra.mxu0 0.0
    %77 = vmatprep.subr.mxu0 0.0
    %78 = vmatpush1.msra.mxu0 0.0
    %79 = vmatprep.subr.mxu0 0.0
    %80 = vmatpush1.msra.mxu0 0.0
    %81 = vmatprep.subr.mxu0 0.0
    %82 = vmatpush1.msra.mxu0 0.0
    %83 = vmatprep.subr.mxu0 0.0
    %84 = vmatpush1.msra.mxu0 0.0
    %85 = vmatprep.subr.mxu0 0.0
    %86 = vmatpush1.msra.mxu0 0.0
    %87 = vmatprep.subr.mxu0 0.0
    %88 = vmatpush1.msra.mxu0 0.0
    %89 = vmatprep.subr.mxu0 0.0
    %90 = vmatpush1.msra.mxu0 0.0
    %91 = vmatprep.subr.mxu0 0.0
    %92 = vmatpush1.msra.mxu0 0.0
    %93 = vmatprep.subr.mxu0 0.0
    %94 = vmatpush1.msra.mxu0 0.0
    %95 = vmatprep.subr.mxu0 0.0
    %96 = vmatpush1.msra.mxu0 0.0
    %97 = vmatprep.subr.mxu0 0.0
    %98 = vmatpush1.msra.mxu0 0.0
    %99 = vmatprep.subr.mxu0 0.0
    %100 = vmatpush1.msra.mxu0 0.0
    %101 = vmatprep.subr.mxu0 0.0
    %102 = vmatpush1.msra.mxu0 0.0
    %103 = vmatprep.subr.mxu0 0.0
    %104 = vmatpush1.msra.mxu0 0.0
    %105 = vmatprep.subr.mxu0 0.0
    %106 = vmatpush1.msra.mxu0 0.0
    %107 = vmatprep.subr.mxu0 0.0
    %108 = vmatpush1.msra.mxu0 0.0
    %109 = vmatprep.subr.mxu0 0.0
    %110 = vmatpush1.msra.mxu0 0.0
    %111 = vmatprep.subr.mxu0 0.0
    %112 = vmatpush1.msra.mxu0 0.0
    %113 = vmatprep.subr.mxu0 0.0
    %114 = vmatpush1.msra.mxu0 0.0
    %115 = vmatprep.subr.mxu0 0.0
    %116 = vmatpush1.msra.mxu0 0.0
    %117 = vmatprep.subr.mxu0 0.0
    %118 = vmatpush1.msra.mxu0 0.0
    %119 = vmatprep.subr.mxu0 0.0
    %120 = vmatpush1.msra.mxu0 0.0
    %121 = vmatprep.subr.mxu0 0.0
    %122 = vmatpush1.msra.mxu0 0.0
    %123 = vmatprep.subr.mxu0 0.0
    %124 = vmatpush1.msra.mxu0 0.0
    %125 = vmatprep.subr.mxu0 0.0
    %126 = vmatpush1.msra.mxu0 0.0
    %127 = vmatprep.mubr.f32.mxu0 0.0
    %128 = vmatmul.mubr.f32.gmra.mrb[0].mxu0 %v36
    %v129 = vpop.f32.mrb[0].mxu0
    %v130 = vadd.f32 %v32, %v129
    %v131 = vpop.f32.mrb[0].mxu0
    %132 = vmatprep.mubr.f32.mxu0 0.0
    %133 = vmatmul.mubr.f32.gmra.mrb[0].mxu0 %v39
    %v134 = vpop.f32.mrb[0].mxu0
    %v135 = vadd.f32 %v32, %v134
    %v136 = vpop.f32.mrb[0].mxu0
    %137 = vmatprep.mubr.f32.mxu0 0.0
    %138 = vmatmul.mubr.f32.gmra.mrb[0].mxu0 %v42
    %v139 = vpop.f32.mrb[0].mxu0
    %v140 = vadd.f32 %v32, %v139
    %v141 = vpop.f32.mrb[0].mxu0
    %142 = vmatprep.mubr.f32.mxu0 0.0
    %143 = vmatmul.mubr.f32.gmra.mrb[0].mxu0 %v45
    %v144 = vpop.f32.mrb[0].mxu0
    %v145 = vadd.f32 %v32, %v144
    %v146 = vpop.f32.mrb[0].mxu0
    %147 = vmatprep.mubr.f32.mxu0 0.0
    %148 = vmatmul.mubr.f32.gmra.mrb[0].mxu0 %v48
    %v149 = vpop.f32.mrb[0].mxu0
    %v150 = vadd.f32 %v32, %v149
    %v151 = vpop.f32.mrb[0].mxu0
    %152 = vmatprep.mubr.f32.mxu0 0.0
    %153 = vmatmul.mubr.f32.gmra.mrb[0].mxu0 %v51
    %v154 = vpop.f32.mrb[0].mxu0
    %v155 = vadd.f32 %v32, %v154
    %v156 = vpop.f32.mrb[0].mxu0
    %157 = vmatprep.mubr.f32.mxu0 0.0
    %158 = vmatmul.mubr.f32.gmra.mrb[0].mxu0 %v54
    %v159 = vpop.f32.mrb[0].mxu0
    %v160 = vadd.f32 %v32, %v159
    %v161 = vpop.f32.mrb[0].mxu0
    %162 = vmatprep.mubr.f32.mxu0 0.0
    %163 = vmatmul.mubr.f32.gmra.mrb[0].mxu0 %v57
    %v164 = vpop.f32.mrb[0].mxu0
    %v165 = vadd.f32 %v32, %v164
    %v166 = vpop.f32.mrb[0].mxu0
    %167 = vdwg.mxu0
    %v168 = vld [vmem:[%s2] sm:$0xff]
    %v169 = vld [vmem:[%s2 + $0x8] sm:$0xff]
    %v170 = vld [vmem:[%s2 + $0x10] sm:$0xff]
    %v171 = vld [vmem:[%s2 + $0x18] sm:$0xff]
    %vm172 = vcmask 261120
    %v174 = vsel %vm172, 0.0, 0
    %176 = vmatprep.subr.mxu0 0.0
    %177 = vmatpush1.msra.mxu0 %v168
    %178 = vmatprep.subr.mxu0 0.0
    %179 = vmatpush1.msra.mxu0 %v169
    %180 = vmatprep.subr.mxu0 0.0
    %181 = vmatpush1.msra.mxu0 %v170
    %182 = vmatprep.subr.mxu0 0.0
    %183 = vmatpush1.msra.mxu0 %v171
    %184 = vmatprep.subr.mxu0 0.0
    %185 = vmatpush1.msra.mxu0 0.0
    %186 = vmatprep.subr.mxu0 0.0
    %187 = vmatpush1.msra.mxu0 0.0
    %188 = vmatprep.subr.mxu0 0.0
    %189 = vmatpush1.msra.mxu0 0.0
    %190 = vmatprep.subr.mxu0 0.0
    %191 = vmatpush1.msra.mxu0 0.0
    %192 = vmatprep.subr.mxu0 0.0
    %193 = vmatpush1.msra.mxu0 0.0
    %194 = vmatprep.subr.mxu0 0.0
    %195 = vmatpush1.msra.mxu0 0.0
    %196 = vmatprep.subr.mxu0 0.0
    %197 = vmatpush1.msra.mxu0 0.0
    %198 = vmatprep.subr.mxu0 0.0
    %199 = vmatpush1.msra.mxu0 0.0
    %200 = vmatprep.subr.mxu0 0.0
    %201 = vmatpush1.msra.mxu0 0.0
    %202 = vmatprep.subr.mxu0 0.0
    %203 = vmatpush1.msra.mxu0 0.0
    %204 = vmatprep.subr.mxu0 0.0
    %205 = vmatpush1.msra.mxu0 0.0
    %206 = vmatprep.subr.mxu0 0.0
    %207 = vmatpush1.msra.mxu0 0.0
    %208 = vmatprep.subr.mxu0 0.0
    %209 = vmatpush1.msra.mxu0 0.0
    %210 = vmatprep.subr.mxu0 0.0
    %211 = vmatpush1.msra.mxu0 0.0
    %212 = vmatprep.subr.mxu0 0.0
    %213 = vmatpush1.msra.mxu0 0.0
    %214 = vmatprep.subr.mxu0 0.0
    %215 = vmatpush1.msra.mxu0 0.0
    %216 = vmatprep.subr.mxu0 0.0
    %217 = vmatpush1.msra.mxu0 0.0
    %218 = vmatprep.subr.mxu0 0.0
    %219 = vmatpush1.msra.mxu0 0.0
    %220 = vmatprep.subr.mxu0 0.0
    %221 = vmatpush1.msra.mxu0 0.0
    %222 = vmatprep.subr.mxu0 0.0
    %223 = vmatpush1.msra.mxu0 0.0
    %224 = vmatprep.subr.mxu0 0.0
    %225 = vmatpush1.msra.mxu0 0.0
    %226 = vmatprep.subr.mxu0 0.0
    %227 = vmatpush1.msra.mxu0 0.0
    %228 = vmatprep.subr.mxu0 0.0
    %229 = vmatpush1.msra.mxu0 0.0
    %230 = vmatprep.subr.mxu0 0.0
    %231 = vmatpush1.msra.mxu0 0.0
    %232 = vmatprep.subr.mxu0 0.0
    %233 = vmatpush1.msra.mxu0 0.0
    %234 = vmatprep.subr.mxu0 0.0
    %235 = vmatpush1.msra.mxu0 0.0
    %236 = vmatprep.subr.mxu0 0.0
    %237 = vmatpush1.msra.mxu0 0.0
    %238 = vmatprep.subr.mxu0 0.0
    %239 = vmatpush1.msra.mxu0 0.0
    %240 = vmatprep.mubr.f32.mxu0 0.0
    %241 = vmatmul.mubr.f32.gmra.mrb[0].mxu0 %v174
    %v242 = vpop.f32.mrb[0].mxu0
    %v243 = vadd.f32 0.0, %v242
    %v244 = vpop.f32.mrb[0].mxu0
    %245 = vdwg.mxu0
    %v246 = vadd.f32 %v130, %v243
    %v247 = vxor.u32 %v246, 2147483648
    %v248 = vmul.f32 %v247, 1.442695
    %v249 = vpow.pop %v248
    %v250 = vadd.f32 %v249, 1.0
    %v251 = vrcp.pop %v250
    %v252 = vmul.f32 1.0, %v251
    %v253 = vtanh.pop %v246
    %v254 = vmul.f32 %v252, 0.0
    %256 = vrot.lane.b32.xlu0 %v253, 64
    %v257 = vpop.permute.xlu0 %256
    %v259 = vmul.f32 %v252, %v257
    %261 = vrot.lane.b32.xlu0 %v259, 32
    %v262 = vpop.permute.xlu0 %261
    %v264 = vadd.f32 %v254, %v262
    %v265 = vtanh.pop %v264
    %267 = vrot.lane.b32.xlu0 %v265, 64
    %v268 = vpop.permute.xlu0 %267
    %v270 = vmul.f32 %v252, %v268
    %272 = vrot.lane.b32.xlu0 %v270, 32
    %v273 = vpop.permute.xlu0 %272
    %vm275 = vcmask 261127
    %276 = vst.msk [vmem:[#allocation2 - $0x7] sm:$0x80] %vm275, %v273
    %v277 = vsel %vm172, %v273, 0
    %279 = vmatprep.subr.mxu0 0.0
    %280 = vmatpush1.msra.mxu0 %v168
    %281 = vmatprep.subr.mxu0 0.0
    %282 = vmatpush1.msra.mxu0 %v169
    %283 = vmatprep.subr.mxu0 0.0
    %284 = vmatpush1.msra.mxu0 %v170
    %285 = vmatprep.subr.mxu0 0.0
    %286 = vmatpush1.msra.mxu0 %v171
    %287 = vmatprep.subr.mxu0 0.0
    %288 = vmatpush1.msra.mxu0 0.0
    %289 = vmatprep.subr.mxu0 0.0
    %290 = vmatpush1.msra.mxu0 0.0
    %291 = vmatprep.subr.mxu0 0.0
    %292 = vmatpush1.msra.mxu0 0.0
    %293 = vmatprep.subr.mxu0 0.0
    %294 = vmatpush1.msra.mxu0 0.0
    %295 = vmatprep.subr.mxu0 0.0
    %296 = vmatpush1.msra.mxu0 0.0
    %297 = vmatprep.subr.mxu0 0.0
    %298 = vmatpush1.msra.mxu0 0.0
    %299 = vmatprep.subr.mxu0 0.0
    %300 = vmatpush1.msra.mxu0 0.0
    %301 = vmatprep.subr.mxu0 0.0
    %302 = vmatpush1.msra.mxu0 0.0
    %303 = vmatprep.subr.mxu0 0.0
    %304 = vmatpush1.msra.mxu0 0.0
    %305 = vmatprep.subr.mxu0 0.0
    %306 = vmatpush1.msra.mxu0 0.0
    %307 = vmatprep.subr.mxu0 0.0
    %308 = vmatpush1.msra.mxu0 0.0
    %309 = vmatprep.subr.mxu0 0.0
    %310 = vmatpush1.msra.mxu0 0.0
    %311 = vmatprep.subr.mxu0 0.0
    %312 = vmatpush1.msra.mxu0 0.0
    %313 = vmatprep.subr.mxu0 0.0
    %314 = vmatpush1.msra.mxu0 0.0
    %315 = vmatprep.subr.mxu0 0.0
    %316 = vmatpush1.msra.mxu0 0.0
    %317 = vmatprep.subr.mxu0 0.0
    %318 = vmatpush1.msra.mxu0 0.0
    %319 = vmatprep.subr.mxu0 0.0
    %320 = vmatpush1.msra.mxu0 0.0
    %321 = vmatprep.subr.mxu0 0.0
    %322 = vmatpush1.msra.mxu0 0.0
    %323 = vmatprep.subr.mxu0 0.0
    %324 = vmatpush1.msra.mxu0 0.0
    %325 = vmatprep.subr.mxu0 0.0
    %326 = vmatpush1.msra.mxu0 0.0
    %327 = vmatprep.subr.mxu0 0.0
    %328 = vmatpush1.msra.mxu0 0.0
    %329 = vmatprep.subr.mxu0 0.0
    %330 = vmatpush1.msra.mxu0 0.0
    %331 = vmatprep.subr.mxu0 0.0
    %332 = vmatpush1.msra.mxu0 0.0
    %333 = vmatprep.subr.mxu0 0.0
    %334 = vmatpush1.msra.mxu0 0.0
    %335 = vmatprep.subr.mxu0 0.0
    %336 = vmatpush1.msra.mxu0 0.0
    %337 = vmatprep.subr.mxu0 0.0
    %338 = vmatpush1.msra.mxu0 0.0
    %339 = vmatprep.subr.mxu0 0.0
    %340 = vmatpush1.msra.mxu0 0.0
    %341 = vmatprep.subr.mxu0 0.0
    %342 = vmatpush1.msra.mxu0 0.0
    %343 = vmatprep.mubr.f32.mxu0 0.0
    %344 = vmatmul.mubr.f32.gmra.mrb[0].mxu0 %v277
    %v345 = vpop.f32.mrb[0].mxu0
    %v346 = vadd.f32 0.0, %v345
    %v347 = vpop.f32.mrb[0].mxu0
    %348 = vdwg.mxu0
    %v349 = vadd.f32 %v135, %v346
    %v350 = vxor.u32 %v349, 2147483648
    %v351 = vmul.f32 %v350, 1.442695
    %v352 = vpow.pop %v351
    %v353 = vadd.f32 %v352, 1.0
    %v354 = vrcp.pop %v353
    %v355 = vmul.f32 1.0, %v354
    %v356 = vtanh.pop %v349
    %v357 = vmul.f32 %v355, %v264
    %359 = vrot.lane.b32.xlu0 %v356, 64
    %v360 = vpop.permute.xlu0 %359
    %v362 = vmul.f32 %v355, %v360
    %364 = vrot.lane.b32.xlu0 %v362, 32
    %v365 = vpop.permute.xlu0 %364
    %v367 = vadd.f32 %v357, %v365
    %v368 = vtanh.pop %v367
    %370 = vrot.lane.b32.xlu0 %v368, 64
    %v371 = vpop.permute.xlu0 %370
    %v373 = vmul.f32 %v355, %v371
    %375 = vrot.lane.b32.xlu0 %v373, 32
    %v376 = vpop.permute.xlu0 %375
    %378 = vst.msk [vmem:[#allocation2 - $0x6] sm:$0x80] %vm275, %v376
    %v379 = vsel %vm172, %v376, 0
    %381 = vmatprep.subr.mxu0 0.0
    %382 = vmatpush1.msra.mxu0 %v168
    %383 = vmatprep.subr.mxu0 0.0
    %384 = vmatpush1.msra.mxu0 %v169
    %385 = vmatprep.subr.mxu0 0.0
    %386 = vmatpush1.msra.mxu0 %v170
    %387 = vmatprep.subr.mxu0 0.0
    %388 = vmatpush1.msra.mxu0 %v171
    %389 = vmatprep.subr.mxu0 0.0
    %390 = vmatpush1.msra.mxu0 0.0
    %391 = vmatprep.subr.mxu0 0.0
    %392 = vmatpush1.msra.mxu0 0.0
    %393 = vmatprep.subr.mxu0 0.0
    %394 = vmatpush1.msra.mxu0 0.0
    %395 = vmatprep.subr.mxu0 0.0
    %396 = vmatpush1.msra.mxu0 0.0
    %397 = vmatprep.subr.mxu0 0.0
    %398 = vmatpush1.msra.mxu0 0.0
    %399 = vmatprep.subr.mxu0 0.0
    %400 = vmatpush1.msra.mxu0 0.0
    %401 = vmatprep.subr.mxu0 0.0
    %402 = vmatpush1.msra.mxu0 0.0
    %403 = vmatprep.subr.mxu0 0.0
    %404 = vmatpush1.msra.mxu0 0.0
    %405 = vmatprep.subr.mxu0 0.0
    %406 = vmatpush1.msra.mxu0 0.0
    %407 = vmatprep.subr.mxu0 0.0
    %408 = vmatpush1.msra.mxu0 0.0
    %409 = vmatprep.subr.mxu0 0.0
    %410 = vmatpush1.msra.mxu0 0.0
    %411 = vmatprep.subr.mxu0 0.0
    %412 = vmatpush1.msra.mxu0 0.0
    %413 = vmatprep.subr.mxu0 0.0
    %414 = vmatpush1.msra.mxu0 0.0
    %415 = vmatprep.subr.mxu0 0.0
    %416 = vmatpush1.msra.mxu0 0.0
    %417 = vmatprep.subr.mxu0 0.0
    %418 = vmatpush1.msra.mxu0 0.0
    %419 = vmatprep.subr.mxu0 0.0
    %420 = vmatpush1.msra.mxu0 0.0
    %421 = vmatprep.subr.mxu0 0.0
    %422 = vmatpush1.msra.mxu0 0.0
    %423 = vmatprep.subr.mxu0 0.0
    %424 = vmatpush1.msra.mxu0 0.0
    %425 = vmatprep.subr.mxu0 0.0
    %426 = vmatpush1.msra.mxu0 0.0
    %427 = vmatprep.subr.mxu0 0.0
    %428 = vmatpush1.msra.mxu0 0.0
    %429 = vmatprep.subr.mxu0 0.0
    %430 = vmatpush1.msra.mxu0 0.0
    %431 = vmatprep.subr.mxu0 0.0
    %432 = vmatpush1.msra.mxu0 0.0
    %433 = vmatprep.subr.mxu0 0.0
    %434 = vmatpush1.msra.mxu0 0.0
    %435 = vmatprep.subr.mxu0 0.0
    %436 = vmatpush1.msra.mxu0 0.0
    %437 = vmatprep.subr.mxu0 0.0
    %438 = vmatpush1.msra.mxu0 0.0
    %439 = vmatprep.subr.mxu0 0.0
    %440 = vmatpush1.msra.mxu0 0.0
    %441 = vmatprep.subr.mxu0 0.0
    %442 = vmatpush1.msra.mxu0 0.0
    %443 = vmatprep.subr.mxu0 0.0
    %444 = vmatpush1.msra.mxu0 0.0
    %445 = vmatprep.mubr.f32.mxu0 0.0
    %446 = vmatmul.mubr.f32.gmra.mrb[0].mxu0 %v379
    %v447 = vpop.f32.mrb[0].mxu0
    %v448 = vadd.f32 0.0, %v447
    %v449 = vpop.f32.mrb[0].mxu0
    %450 = vdwg.mxu0
    %v451 = vadd.f32 %v140, %v448
    %v452 = vxor.u32 %v451, 2147483648
    %v453 = vmul.f32 %v452, 1.442695
    %v454 = vpow.pop %v453
    %v455 = vadd.f32 %v454, 1.0
    %v456 = vrcp.pop %v455
    %v457 = vmul.f32 1.0, %v456
    %v458 = vtanh.pop %v451
    %v459 = vmul.f32 %v457, %v367
    %461 = vrot.lane.b32.xlu0 %v458, 64
    %v462 = vpop.permute.xlu0 %461
    %v464 = vmul.f32 %v457, %v462
    %466 = vrot.lane.b32.xlu0 %v464, 32
    %v467 = vpop.permute.xlu0 %466
    %v469 = vadd.f32 %v459, %v467
    %v470 = vtanh.pop %v469
    %472 = vrot.lane.b32.xlu0 %v470, 64
    %v473 = vpop.permute.xlu0 %472
    %v475 = vmul.f32 %v457, %v473
    %477 = vrot.lane.b32.xlu0 %v475, 32
    %v478 = vpop.permute.xlu0 %477
    %480 = vst.msk [vmem:[#allocation2 - $0x5] sm:$0x80] %vm275, %v478
    %v481 = vsel %vm172, %v478, 0
    %483 = vmatprep.subr.mxu0 0.0
    %484 = vmatpush1.msra.mxu0 %v168
    %485 = vmatprep.subr.mxu0 0.0
    %486 = vmatpush1.msra.mxu0 %v169
    %487 = vmatprep.subr.mxu0 0.0
    %488 = vmatpush1.msra.mxu0 %v170
    %489 = vmatprep.subr.mxu0 0.0
    %490 = vmatpush1.msra.mxu0 %v171
    %491 = vmatprep.subr.mxu0 0.0
    %492 = vmatpush1.msra.mxu0 0.0
    %493 = vmatprep.subr.mxu0 0.0
    %494 = vmatpush1.msra.mxu0 0.0
    %495 = vmatprep.subr.mxu0 0.0
    %496 = vmatpush1.msra.mxu0 0.0
    %497 = vmatprep.subr.mxu0 0.0
    %498 = vmatpush1.msra.mxu0 0.0
    %499 = vmatprep.subr.mxu0 0.0
    %500 = vmatpush1.msra.mxu0 0.0
    %501 = vmatprep.subr.mxu0 0.0
    %502 = vmatpush1.msra.mxu0 0.0
    %503 = vmatprep.subr.mxu0 0.0
    %504 = vmatpush1.msra.mxu0 0.0
    %505 = vmatprep.subr.mxu0 0.0
    %506 = vmatpush1.msra.mxu0 0.0
    %507 = vmatprep.subr.mxu0 0.0
    %508 = vmatpush1.msra.mxu0 0.0
    %509 = vmatprep.subr.mxu0 0.0
    %510 = vmatpush1.msra.mxu0 0.0
    %511 = vmatprep.subr.mxu0 0.0
    %512 = vmatpush1.msra.mxu0 0.0
    %513 = vmatprep.subr.mxu0 0.0
    %514 = vmatpush1.msra.mxu0 0.0
    %515 = vmatprep.subr.mxu0 0.0
    %516 = vmatpush1.msra.mxu0 0.0
    %517 = vmatprep.subr.mxu0 0.0
    %518 = vmatpush1.msra.mxu0 0.0
    %519 = vmatprep.subr.mxu0 0.0
    %520 = vmatpush1.msra.mxu0 0.0
    %521 = vmatprep.subr.mxu0 0.0
    %522 = vmatpush1.msra.mxu0 0.0
    %523 = vmatprep.subr.mxu0 0.0
    %524 = vmatpush1.msra.mxu0 0.0
    %525 = vmatprep.subr.mxu0 0.0
    %526 = vmatpush1.msra.mxu0 0.0
    %527 = vmatprep.subr.mxu0 0.0
    %528 = vmatpush1.msra.mxu0 0.0
    %529 = vmatprep.subr.mxu0 0.0
    %530 = vmatpush1.msra.mxu0 0.0
    %531 = vmatprep.subr.mxu0 0.0
    %532 = vmatpush1.msra.mxu0 0.0
    %533 = vmatprep.subr.mxu0 0.0
    %534 = vmatpush1.msra.mxu0 0.0
    %535 = vmatprep.subr.mxu0 0.0
    %536 = vmatpush1.msra.mxu0 0.0
    %537 = vmatprep.subr.mxu0 0.0
    %538 = vmatpush1.msra.mxu0 0.0
    %539 = vmatprep.subr.mxu0 0.0
    %540 = vmatpush1.msra.mxu0 0.0
    %541 = vmatprep.subr.mxu0 0.0
    %542 = vmatpush1.msra.mxu0 0.0
    %543 = vmatprep.subr.mxu0 0.0
    %544 = vmatpush1.msra.mxu0 0.0
    %545 = vmatprep.subr.mxu0 0.0
    %546 = vmatpush1.msra.mxu0 0.0
    %547 = vmatprep.mubr.f32.mxu0 0.0
    %548 = vmatmul.mubr.f32.gmra.mrb[0].mxu0 %v481
    %v549 = vpop.f32.mrb[0].mxu0
    %v550 = vadd.f32 0.0, %v549
    %v551 = vpop.f32.mrb[0].mxu0
    %552 = vdwg.mxu0
    %v553 = vadd.f32 %v145, %v550
    %v554 = vxor.u32 %v553, 2147483648
    %v555 = vmul.f32 %v554, 1.442695
    %v556 = vpow.pop %v555
    %v557 = vadd.f32 %v556, 1.0
    %v558 = vrcp.pop %v557
    %v559 = vmul.f32 1.0, %v558
    %v560 = vtanh.pop %v553
    %v561 = vmul.f32 %v559, %v469
    %563 = vrot.lane.b32.xlu0 %v560, 64
    %v564 = vpop.permute.xlu0 %563
    %v566 = vmul.f32 %v559, %v564
    %568 = vrot.lane.b32.xlu0 %v566, 32
    %v569 = vpop.permute.xlu0 %568
    %v571 = vadd.f32 %v561, %v569
    %v572 = vtanh.pop %v571
    %574 = vrot.lane.b32.xlu0 %v572, 64
    %v575 = vpop.permute.xlu0 %574
    %v577 = vmul.f32 %v559, %v575
    %579 = vrot.lane.b32.xlu0 %v577, 32
    %v580 = vpop.permute.xlu0 %579
    %582 = vst.msk [vmem:[#allocation2 - $0x4] sm:$0x80] %vm275, %v580
    %v583 = vsel %vm172, %v580, 0
    %585 = vmatprep.subr.mxu0 0.0
    %586 = vmatpush1.msra.mxu0 %v168
    %587 = vmatprep.subr.mxu0 0.0
    %588 = vmatpush1.msra.mxu0 %v169
    %589 = vmatprep.subr.mxu0 0.0
    %590 = vmatpush1.msra.mxu0 %v170
    %591 = vmatprep.subr.mxu0 0.0
    %592 = vmatpush1.msra.mxu0 %v171
    %593 = vmatprep.subr.mxu0 0.0
    %594 = vmatpush1.msra.mxu0 0.0
    %595 = vmatprep.subr.mxu0 0.0
    %596 = vmatpush1.msra.mxu0 0.0
    %597 = vmatprep.subr.mxu0 0.0
    %598 = vmatpush1.msra.mxu0 0.0
    %599 = vmatprep.subr.mxu0 0.0
    %600 = vmatpush1.msra.mxu0 0.0
    %601 = vmatprep.subr.mxu0 0.0
    %602 = vmatpush1.msra.mxu0 0.0
    %603 = vmatprep.subr.mxu0 0.0
    %604 = vmatpush1.msra.mxu0 0.0
    %605 = vmatprep.subr.mxu0 0.0
    %606 = vmatpush1.msra.mxu0 0.0
    %607 = vmatprep.subr.mxu0 0.0
    %608 = vmatpush1.msra.mxu0 0.0
    %609 = vmatprep.subr.mxu0 0.0
    %610 = vmatpush1.msra.mxu0 0.0
    %611 = vmatprep.subr.mxu0 0.0
    %612 = vmatpush1.msra.mxu0 0.0
    %613 = vmatprep.subr.mxu0 0.0
    %614 = vmatpush1.msra.mxu0 0.0
    %615 = vmatprep.subr.mxu0 0.0
    %616 = vmatpush1.msra.mxu0 0.0
    %617 = vmatprep.subr.mxu0 0.0
    %618 = vmatpush1.msra.mxu0 0.0
    %619 = vmatprep.subr.mxu0 0.0
    %620 = vmatpush1.msra.mxu0 0.0
    %621 = vmatprep.subr.mxu0 0.0
    %622 = vmatpush1.msra.mxu0 0.0
    %623 = vmatprep.subr.mxu0 0.0
    %624 = vmatpush1.msra.mxu0 0.0
    %625 = vmatprep.subr.mxu0 0.0
    %626 = vmatpush1.msra.mxu0 0.0
    %627 = vmatprep.subr.mxu0 0.0
    %628 = vmatpush1.msra.mxu0 0.0
    %629 = vmatprep.subr.mxu0 0.0
    %630 = vmatpush1.msra.mxu0 0.0
    %631 = vmatprep.subr.mxu0 0.0
    %632 = vmatpush1.msra.mxu0 0.0
    %633 = vmatprep.subr.mxu0 0.0
    %634 = vmatpush1.msra.mxu0 0.0
    %635 = vmatprep.subr.mxu0 0.0
    %636 = vmatpush1.msra.mxu0 0.0
    %637 = vmatprep.subr.mxu0 0.0
    %638 = vmatpush1.msra.mxu0 0.0
    %639 = vmatprep.subr.mxu0 0.0
    %640 = vmatpush1.msra.mxu0 0.0
    %641 = vmatprep.subr.mxu0 0.0
    %642 = vmatpush1.msra.mxu0 0.0
    %643 = vmatprep.subr.mxu0 0.0
    %644 = vmatpush1.msra.mxu0 0.0
    %645 = vmatprep.subr.mxu0 0.0
    %646 = vmatpush1.msra.mxu0 0.0
    %647 = vmatprep.subr.mxu0 0.0
    %648 = vmatpush1.msra.mxu0 0.0
    %649 = vmatprep.mubr.f32.mxu0 0.0
    %650 = vmatmul.mubr.f32.gmra.mrb[0].mxu0 %v583
    %v651 = vpop.f32.mrb[0].mxu0
    %v652 = vadd.f32 0.0, %v651
    %v653 = vpop.f32.mrb[0].mxu0
    %654 = vdwg.mxu0
    %v655 = vadd.f32 %v150, %v652
    %v656 = vxor.u32 %v655, 2147483648
    %v657 = vmul.f32 %v656, 1.442695
    %v658 = vpow.pop %v657
    %v659 = vadd.f32 %v658, 1.0
    %v660 = vrcp.pop %v659
    %v661 = vmul.f32 1.0, %v660
    %v662 = vtanh.pop %v655
    %v663 = vmul.f32 %v661, %v571
    %665 = vrot.lane.b32.xlu0 %v662, 64
    %v666 = vpop.permute.xlu0 %665
    %v668 = vmul.f32 %v661, %v666
    %670 = vrot.lane.b32.xlu0 %v668, 32
    %v671 = vpop.permute.xlu0 %670
    %v673 = vadd.f32 %v663, %v671
    %v674 = vtanh.pop %v673
    %676 = vrot.lane.b32.xlu0 %v674, 64
    %v677 = vpop.permute.xlu0 %676
    %v679 = vmul.f32 %v661, %v677
    %681 = vrot.lane.b32.xlu0 %v679, 32
    %v682 = vpop.permute.xlu0 %681
    %684 = vst.msk [vmem:[#allocation2 - $0x3] sm:$0x80] %vm275, %v682
    %v685 = vsel %vm172, %v682, 0
    %687 = vmatprep.subr.mxu0 0.0
    %688 = vmatpush1.msra.mxu0 %v168
    %689 = vmatprep.subr.mxu0 0.0
    %690 = vmatpush1.msra.mxu0 %v169
    %691 = vmatprep.subr.mxu0 0.0
    %692 = vmatpush1.msra.mxu0 %v170
    %693 = vmatprep.subr.mxu0 0.0
    %694 = vmatpush1.msra.mxu0 %v171
    %695 = vmatprep.subr.mxu0 0.0
    %696 = vmatpush1.msra.mxu0 0.0
    %697 = vmatprep.subr.mxu0 0.0
    %698 = vmatpush1.msra.mxu0 0.0
    %699 = vmatprep.subr.mxu0 0.0
    %700 = vmatpush1.msra.mxu0 0.0
    %701 = vmatprep.subr.mxu0 0.0
    %702 = vmatpush1.msra.mxu0 0.0
    %703 = vmatprep.subr.mxu0 0.0
    %704 = vmatpush1.msra.mxu0 0.0
    %705 = vmatprep.subr.mxu0 0.0
    %706 = vmatpush1.msra.mxu0 0.0
    %707 = vmatprep.subr.mxu0 0.0
    %708 = vmatpush1.msra.mxu0 0.0
    %709 = vmatprep.subr.mxu0 0.0
    %710 = vmatpush1.msra.mxu0 0.0
    %711 = vmatprep.subr.mxu0 0.0
    %712 = vmatpush1.msra.mxu0 0.0
    %713 = vmatprep.subr.mxu0 0.0
    %714 = vmatpush1.msra.mxu0 0.0
    %715 = vmatprep.subr.mxu0 0.0
    %716 = vmatpush1.msra.mxu0 0.0
    %717 = vmatprep.subr.mxu0 0.0
    %718 = vmatpush1.msra.mxu0 0.0
    %719 = vmatprep.subr.mxu0 0.0
    %720 = vmatpush1.msra.mxu0 0.0
    %721 = vmatprep.subr.mxu0 0.0
    %722 = vmatpush1.msra.mxu0 0.0
    %723 = vmatprep.subr.mxu0 0.0
    %724 = vmatpush1.msra.mxu0 0.0
    %725 = vmatprep.subr.mxu0 0.0
    %726 = vmatpush1.msra.mxu0 0.0
    %727 = vmatprep.subr.mxu0 0.0
    %728 = vmatpush1.msra.mxu0 0.0
    %729 = vmatprep.subr.mxu0 0.0
    %730 = vmatpush1.msra.mxu0 0.0
    %731 = vmatprep.subr.mxu0 0.0
    %732 = vmatpush1.msra.mxu0 0.0
    %733 = vmatprep.subr.mxu0 0.0
    %734 = vmatpush1.msra.mxu0 0.0
    %735 = vmatprep.subr.mxu0 0.0
    %736 = vmatpush1.msra.mxu0 0.0
    %737 = vmatprep.subr.mxu0 0.0
    %738 = vmatpush1.msra.mxu0 0.0
    %739 = vmatprep.subr.mxu0 0.0
    %740 = vmatpush1.msra.mxu0 0.0
    %741 = vmatprep.subr.mxu0 0.0
    %742 = vmatpush1.msra.mxu0 0.0
    %743 = vmatprep.subr.mxu0 0.0
    %744 = vmatpush1.msra.mxu0 0.0
    %745 = vmatprep.subr.mxu0 0.0
    %746 = vmatpush1.msra.mxu0 0.0
    %747 = vmatprep.subr.mxu0 0.0
    %748 = vmatpush1.msra.mxu0 0.0
    %749 = vmatprep.subr.mxu0 0.0
    %750 = vmatpush1.msra.mxu0 0.0
    %751 = vmatprep.mubr.f32.mxu0 0.0
    %752 = vmatmul.mubr.f32.gmra.mrb[0].mxu0 %v685
    %v753 = vpop.f32.mrb[0].mxu0
    %v754 = vadd.f32 0.0, %v753
    %v755 = vpop.f32.mrb[0].mxu0
    %756 = vdwg.mxu0
    %v757 = vadd.f32 %v155, %v754
    %v758 = vxor.u32 %v757, 2147483648
    %v759 = vmul.f32 %v758, 1.442695
    %v760 = vpow.pop %v759
    %v761 = vadd.f32 %v760, 1.0
    %v762 = vrcp.pop %v761
    %v763 = vmul.f32 1.0, %v762
    %v764 = vtanh.pop %v757
    %v765 = vmul.f32 %v763, %v673
    %767 = vrot.lane.b32.xlu0 %v764, 64
    %v768 = vpop.permute.xlu0 %767
    %v770 = vmul.f32 %v763, %v768
    %772 = vrot.lane.b32.xlu0 %v770, 32
    %v773 = vpop.permute.xlu0 %772
    %v775 = vadd.f32 %v765, %v773
    %v776 = vtanh.pop %v775
    %778 = vrot.lane.b32.xlu0 %v776, 64
    %v779 = vpop.permute.xlu0 %778
    %v781 = vmul.f32 %v763, %v779
    %783 = vrot.lane.b32.xlu0 %v781, 32
    %v784 = vpop.permute.xlu0 %783
    %786 = vst.msk [vmem:[#allocation2 - $0x2] sm:$0x80] %vm275, %v784
    %v787 = vsel %vm172, %v784, 0
    %789 = vmatprep.subr.mxu0 0.0
    %790 = vmatpush1.msra.mxu0 %v168
    %791 = vmatprep.subr.mxu0 0.0
    %792 = vmatpush1.msra.mxu0 %v169
    %793 = vmatprep.subr.mxu0 0.0
    %794 = vmatpush1.msra.mxu0 %v170
    %795 = vmatprep.subr.mxu0 0.0
    %796 = vmatpush1.msra.mxu0 %v171
    %797 = vmatprep.subr.mxu0 0.0
    %798 = vmatpush1.msra.mxu0 0.0
    %799 = vmatprep.subr.mxu0 0.0
    %800 = vmatpush1.msra.mxu0 0.0
    %801 = vmatprep.subr.mxu0 0.0
    %802 = vmatpush1.msra.mxu0 0.0
    %803 = vmatprep.subr.mxu0 0.0
    %804 = vmatpush1.msra.mxu0 0.0
    %805 = vmatprep.subr.mxu0 0.0
    %806 = vmatpush1.msra.mxu0 0.0
    %807 = vmatprep.subr.mxu0 0.0
    %808 = vmatpush1.msra.mxu0 0.0
    %809 = vmatprep.subr.mxu0 0.0
    %810 = vmatpush1.msra.mxu0 0.0
    %811 = vmatprep.subr.mxu0 0.0
    %812 = vmatpush1.msra.mxu0 0.0
    %813 = vmatprep.subr.mxu0 0.0
    %814 = vmatpush1.msra.mxu0 0.0
    %815 = vmatprep.subr.mxu0 0.0
    %816 = vmatpush1.msra.mxu0 0.0
    %817 = vmatprep.subr.mxu0 0.0
    %818 = vmatpush1.msra.mxu0 0.0
    %819 = vmatprep.subr.mxu0 0.0
    %820 = vmatpush1.msra.mxu0 0.0
    %821 = vmatprep.subr.mxu0 0.0
    %822 = vmatpush1.msra.mxu0 0.0
    %823 = vmatprep.subr.mxu0 0.0
    %824 = vmatpush1.msra.mxu0 0.0
    %825 = vmatprep.subr.mxu0 0.0
    %826 = vmatpush1.msra.mxu0 0.0
    %827 = vmatprep.subr.mxu0 0.0
    %828 = vmatpush1.msra.mxu0 0.0
    %829 = vmatprep.subr.mxu0 0.0
    %830 = vmatpush1.msra.mxu0 0.0
    %831 = vmatprep.subr.mxu0 0.0
    %832 = vmatpush1.msra.mxu0 0.0
    %833 = vmatprep.subr.mxu0 0.0
    %834 = vmatpush1.msra.mxu0 0.0
    %835 = vmatprep.subr.mxu0 0.0
    %836 = vmatpush1.msra.mxu0 0.0
    %837 = vmatprep.subr.mxu0 0.0
    %838 = vmatpush1.msra.mxu0 0.0
    %839 = vmatprep.subr.mxu0 0.0
    %840 = vmatpush1.msra.mxu0 0.0
    %841 = vmatprep.subr.mxu0 0.0
    %842 = vmatpush1.msra.mxu0 0.0
    %843 = vmatprep.subr.mxu0 0.0
    %844 = vmatpush1.msra.mxu0 0.0
    %845 = vmatprep.subr.mxu0 0.0
    %846 = vmatpush1.msra.mxu0 0.0
    %847 = vmatprep.subr.mxu0 0.0
    %848 = vmatpush1.msra.mxu0 0.0
    %849 = vmatprep.subr.mxu0 0.0
    %850 = vmatpush1.msra.mxu0 0.0
    %851 = vmatprep.subr.mxu0 0.0
    %852 = vmatpush1.msra.mxu0 0.0
    %853 = vmatprep.mubr.f32.mxu0 0.0
    %854 = vmatmul.mubr.f32.gmra.mrb[0].mxu0 %v787
    %v855 = vpop.f32.mrb[0].mxu0
    %v856 = vadd.f32 0.0, %v855
    %v857 = vpop.f32.mrb[0].mxu0
    %858 = vdwg.mxu0
    %v859 = vadd.f32 %v160, %v856
    %v860 = vxor.u32 %v859, 2147483648
    %v861 = vmul.f32 %v860, 1.442695
    %v862 = vpow.pop %v861
    %v863 = vadd.f32 %v862, 1.0
    %v864 = vrcp.pop %v863
    %v865 = vmul.f32 1.0, %v864
    %v866 = vtanh.pop %v859
    %v867 = vmul.f32 %v865, %v775
    %869 = vrot.lane.b32.xlu0 %v866, 64
    %v870 = vpop.permute.xlu0 %869
    %v872 = vmul.f32 %v865, %v870
    %874 = vrot.lane.b32.xlu0 %v872, 32
    %v875 = vpop.permute.xlu0 %874
    %v877 = vadd.f32 %v867, %v875
    %v878 = vtanh.pop %v877
    %880 = vrot.lane.b32.xlu0 %v878, 64
    %v881 = vpop.permute.xlu0 %880
    %v883 = vmul.f32 %v865, %v881
    %885 = vrot.lane.b32.xlu0 %v883, 32
    %v886 = vpop.permute.xlu0 %885
    %888 = vst.msk [vmem:[#allocation2 - $0x1] sm:$0x80] %vm275, %v886
    %v889 = vsel %vm172, %v886, 0
    %891 = vmatprep.subr.mxu0 0.0
    %892 = vmatpush1.msra.mxu0 %v168
    %893 = vmatprep.subr.mxu0 0.0
    %894 = vmatpush1.msra.mxu0 %v169
    %895 = vmatprep.subr.mxu0 0.0
    %896 = vmatpush1.msra.mxu0 %v170
    %897 = vmatprep.subr.mxu0 0.0
    %898 = vmatpush1.msra.mxu0 %v171
    %899 = vmatprep.subr.mxu0 0.0
    %900 = vmatpush1.msra.mxu0 0.0
    %901 = vmatprep.subr.mxu0 0.0
    %902 = vmatpush1.msra.mxu0 0.0
    %903 = vmatprep.subr.mxu0 0.0
    %904 = vmatpush1.msra.mxu0 0.0
    %905 = vmatprep.subr.mxu0 0.0
    %906 = vmatpush1.msra.mxu0 0.0
    %907 = vmatprep.subr.mxu0 0.0
    %908 = vmatpush1.msra.mxu0 0.0
    %909 = vmatprep.subr.mxu0 0.0
    %910 = vmatpush1.msra.mxu0 0.0
    %911 = vmatprep.subr.mxu0 0.0
    %912 = vmatpush1.msra.mxu0 0.0
    %913 = vmatprep.subr.mxu0 0.0
    %914 = vmatpush1.msra.mxu0 0.0
    %915 = vmatprep.subr.mxu0 0.0
    %916 = vmatpush1.msra.mxu0 0.0
    %917 = vmatprep.subr.mxu0 0.0
    %918 = vmatpush1.msra.mxu0 0.0
    %919 = vmatprep.subr.mxu0 0.0
    %920 = vmatpush1.msra.mxu0 0.0
    %921 = vmatprep.subr.mxu0 0.0
    %922 = vmatpush1.msra.mxu0 0.0
    %923 = vmatprep.subr.mxu0 0.0
    %924 = vmatpush1.msra.mxu0 0.0
    %925 = vmatprep.subr.mxu0 0.0
    %926 = vmatpush1.msra.mxu0 0.0
    %927 = vmatprep.subr.mxu0 0.0
    %928 = vmatpush1.msra.mxu0 0.0
    %929 = vmatprep.subr.mxu0 0.0
    %930 = vmatpush1.msra.mxu0 0.0
    %931 = vmatprep.subr.mxu0 0.0
    %932 = vmatpush1.msra.mxu0 0.0
    %933 = vmatprep.subr.mxu0 0.0
    %934 = vmatpush1.msra.mxu0 0.0
    %935 = vmatprep.subr.mxu0 0.0
    %936 = vmatpush1.msra.mxu0 0.0
    %937 = vmatprep.subr.mxu0 0.0
    %938 = vmatpush1.msra.mxu0 0.0
    %939 = vmatprep.subr.mxu0 0.0
    %940 = vmatpush1.msra.mxu0 0.0
    %941 = vmatprep.subr.mxu0 0.0
    %942 = vmatpush1.msra.mxu0 0.0
    %943 = vmatprep.subr.mxu0 0.0
    %944 = vmatpush1.msra.mxu0 0.0
    %945 = vmatprep.subr.mxu0 0.0
    %946 = vmatpush1.msra.mxu0 0.0
    %947 = vmatprep.subr.mxu0 0.0
    %948 = vmatpush1.msra.mxu0 0.0
    %949 = vmatprep.subr.mxu0 0.0
    %950 = vmatpush1.msra.mxu0 0.0
    %951 = vmatprep.subr.mxu0 0.0
    %952 = vmatpush1.msra.mxu0 0.0
    %953 = vmatprep.subr.mxu0 0.0
    %954 = vmatpush1.msra.mxu0 0.0
    %955 = vmatprep.mubr.f32.mxu0 0.0
    %956 = vmatmul.mubr.f32.gmra.mrb[0].mxu0 %v889
    %v957 = vpop.f32.mrb[0].mxu0
    %v958 = vadd.f32 0.0, %v957
    %v959 = vpop.f32.mrb[0].mxu0
    %960 = vdwg.mxu0
    %v961 = vadd.f32 %v165, %v958
    %v962 = vxor.u32 %v961, 2147483648
    %v963 = vmul.f32 %v962, 1.442695
    %v964 = vpow.pop %v963
    %v965 = vadd.f32 %v964, 1.0
    %v966 = vrcp.pop %v965
    %v967 = vmul.f32 1.0, %v966
    %v968 = vtanh.pop %v961
    %v969 = vmul.f32 %v967, %v877
    %971 = vrot.lane.b32.xlu0 %v968, 64
    %v972 = vpop.permute.xlu0 %971
    %v974 = vmul.f32 %v967, %v972
    %976 = vrot.lane.b32.xlu0 %v974, 32
    %v977 = vpop.permute.xlu0 %976
    %v979 = vadd.f32 %v969, %v977
    %v980 = vtanh.pop %v979
    %982 = vrot.lane.b32.xlu0 %v980, 64
    %v983 = vpop.permute.xlu0 %982
    %v985 = vmul.f32 %v967, %v983
    %987 = vrot.lane.b32.xlu0 %v985, 32
    %v988 = vpop.permute.xlu0 %987
    %990 = vst.msk [vmem:[#allocation2] sm:$0x80] %vm275, %v988
    // Predicated region
    $region18: #{tpu_custom_call.1} parent=1 // pred_check
      _
    $region19: #{tpu_custom_call.1} parent=1 // pred_check_branch
      %992 = sbr.rel (0) target = $region21
    $region20: #{tpu_custom_call.1} parent=1 // pred_region
      %s994 = ssub.s32 128, 128
      %995 = vsyncadd [#allocation3], %s994
      %s997 = sshll.u32 [#allocation2], 4
      %s998 = int_to_ptr.vmem [resolvable:$true] %s997
      %1000 = dma.vmem_to_hbm [thread:$0]  %s998, 128, %s4, [#allocation3]
    $region21: #{tpu_custom_call.1} parent=1 // pred_fallthru
      _
    // Predicated region
    $region22: #{tpu_custom_call.1} parent=1 // pred_check
      _
    $region23: #{tpu_custom_call.1} parent=1 // pred_check_branch
      %1002 = sbr.rel (0) target = $region25
    $region24: #{tpu_custom_call.1} parent=1 // pred_region
      %1003 = dma.done [#allocation3], 128
    $region25: #{tpu_custom_call.1} parent=1 // pred_fallthru
      _
    %1004 = vsyncpa [#allocation3], 1

</llo_original>
